<compile_context>
chip_gen: v7x
topology: tpu7x:2x2x1
jax: 0.10.0
libtpu: 0.0.40
codegen_flags: <defaults>
</compile_context>

<pallas_src>
from functools import partial

import jax
import jax.numpy as jnp
from jax.experimental import pallas as pl
from jax.experimental.pallas import tpu as pltpu

H_STATE = 64                      # hidden units of SubModel_state.fc1
H_REWARD = 32                     # hidden units of SubModel_reward.fc1
H_PACKED = H_STATE + H_REWARD     # 96 packed hidden units per ensemble member
SR_PAD = 128                      # lane-dense per-member output width (S+R padded)


def _fused_ensemble_kernel(x_ref, w1_ref, w2_ref, b2_ref, o_ref):
    """All ensemble members, both heads, in one grid step (2 MXU pushes total).

    x  : (B, S+A+1)       shared input; trailing ones column folds b1 into W1
    w1 : (S+A+1, E*96)    per-member first layers packed along N (cols e*96:(e+1)*96)
    w2 : (E*96, E*128)    block-diagonal second layers, lane-padded to 128 per member
    b2 : (1, E*128)       packed second-layer biases (zero in the padding lanes)
    o  : (B, E*128)       lane-dense output slab
    """
    x = x_ref[...]
    h = jnp.maximum(
        jnp.dot(x, w1_ref[...], preferred_element_type=jnp.float32), 0.0)
    y = jnp.dot(h, w2_ref[...], preferred_element_type=jnp.float32) + b2_ref[...]
    o_ref[...] = y.astype(o_ref.dtype)


def _fused_forward(x, w1, w2, b2):
    """Single pallas_call, single grid step, whole arrays resident in VMEM."""
    B, K = x.shape
    EH = w1.shape[1]      # E * 96
    ESR = w2.shape[1]     # E * 128
    return pl.pallas_call(
        _fused_ensemble_kernel,
        out_shape=jax.ShapeDtypeStruct((B, ESR), jnp.float32),
        grid=(1,),
        in_specs=[
            pl.BlockSpec((B, K), lambda i: (0, 0)),       # shared [state|action|1]
            pl.BlockSpec((K, EH), lambda i: (0, 0)),      # packed W1 (+ bias row)
            pl.BlockSpec((EH, ESR), lambda i: (0, 0)),    # block-diag packed W2
            pl.BlockSpec((1, ESR), lambda i: (0, 0)),     # packed b2
        ],
        out_specs=pl.BlockSpec((B, ESR), lambda i: (0, 0)),
        compiler_params=pltpu.CompilerParams(
            dimension_semantics=("arbitrary",)),
    )(x, w1, w2, b2)


@partial(jax.jit, static_argnames=("state_size", "reward_size"))
def simple_dynamic_model_forward(packed, state, action, *, state_size, reward_size):
    """Matches SimpleDynamicModel.forward.

    Returns stacked predictions: (E, B, state_size) and (E, B, reward_size).
    Member e's prediction (the e-th list entry in the torch module) is preds[e].
    """
    B = state.shape[0]
    x = jnp.concatenate(
        [state.astype(jnp.float32), action.astype(jnp.float32),
         jnp.ones((B, 1), jnp.float32)], axis=1)              # (B, S+A+1)
    out = _fused_forward(x, packed["w1"], packed["w2"], packed["b2"])  # (B, E*128)
    E = packed["w2"].shape[0] // H_PACKED
    out = out.reshape(B, E, SR_PAD).transpose(1, 0, 2)        # (E, B, 128) in-jit
    predicted_states = out[:, :, :state_size]
    predicted_rewards = out[:, :, state_size:state_size + reward_size]
    return predicted_states, predicted_rewards


# --------------------------- parameter setup (plain JAX glue) ---------------------------

def _linear_params(key, fan_in, fan_out):
    """Deterministic init mimicking nn.Linear's U(-1/sqrt(fan_in), 1/sqrt(fan_in))."""
    kw, kb = jax.random.split(key)
    bound = 1.0 / jnp.sqrt(jnp.float32(fan_in))
    w = jax.random.uniform(kw, (fan_in, fan_out), jnp.float32, -bound, bound)
    b = jax.random.uniform(kb, (1, fan_out), jnp.float32, -bound, bound)
    return w, b


def init_simple_dynamic_model(key, state_size, action_size, reward_size, ensemble_size=1):
    """Per-member params identical in structure to the PyTorch module."""
    in_size = state_size + action_size
    params = {"state": [], "reward": []}
    keys = jax.random.split(key, ensemble_size * 4).reshape(ensemble_size, 4, 2)
    for e in range(ensemble_size):
        sw1, sb1 = _linear_params(keys[e, 0], in_size, H_STATE)
        sw2, sb2 = _linear_params(keys[e, 1], H_STATE, state_size)
        params["state"].append((sw1, sb1, sw2, sb2))
        rw1, rb1 = _linear_params(keys[e, 2], in_size, H_REWARD)
        rw2, rb2 = _linear_params(keys[e, 3], H_REWARD, reward_size)
        params["reward"].append((rw1, rb1, rw2, rb2))
    return params


def pack_params(params, state_size, action_size, reward_size):
    """Pack the whole ensemble into 3 dense arrays for the single-step kernel.

    w1 : (S+A+1, E*96)   cols e*96:(e+1)*96 = [W1_state | W1_reward] of member e,
                          last row = packed b1 (folded via the ones input column)
    w2 : (E*96, E*128)   block-diagonal; block e has [:64,:S]=W2_state, [64:,S:S+R]=W2_reward
    b2 : (1, E*128)      per-member [b2_state | b2_reward | 0-pad]
    """
    E = len(params["state"])
    S, R = state_size, reward_size
    w1_blocks = []
    w2 = jnp.zeros((E * H_PACKED, E * SR_PAD), jnp.float32)
    b2 = jnp.zeros((1, E * SR_PAD), jnp.float32)
    for e in range(E):
        sw1, sb1, sw2, sb2 = params["state"][e]
        rw1, rb1, rw2, rb2 = params["reward"][e]
        w1_e = jnp.concatenate(
            [jnp.concatenate([sw1, rw1], axis=1),        # (S+A, 96)
             jnp.concatenate([sb1, rb1], axis=1)],        # (1, 96) bias row
            axis=0)                                       # (S+A+1, 96)
        w1_blocks.append(w1_e)

        blk = jnp.zeros((H_PACKED, SR_PAD), jnp.float32)
        blk = blk.at[:H_STATE, :S].set(sw2)
        blk = blk.at[H_STATE:, S:S + R].set(rw2)
        w2 = w2.at[e * H_PACKED:(e + 1) * H_PACKED,
                   e * SR_PAD:(e + 1) * SR_PAD].set(blk)

        b2 = b2.at[0, e * SR_PAD:e * SR_PAD + S].set(sb2[0])
        b2 = b2.at[0, e * SR_PAD + S:e * SR_PAD + S + R].set(rb2[0])

    w1 = jnp.concatenate(w1_blocks, axis=1)               # (S+A+1, E*96)
    return {"w1": w1, "w2": w2, "b2": b2}


if __name__ == "__main__":
    state_size = 16
    action_size = 8
    reward_size = 1
    ensemble_size = 2
    batch = 8

    key = jax.random.PRNGKey(0)
    k_params, k_state, k_action = jax.random.split(key, 3)

    params = init_simple_dynamic_model(
        k_params, state_size, action_size, reward_size, ensemble_size)
    packed = pack_params(params, state_size, action_size, reward_size)

    state = jax.random.normal(k_state, (batch, state_size), jnp.float32)
    action = jax.random.normal(k_action, (batch, action_size), jnp.float32)

    pred_states, pred_rewards = simple_dynamic_model_forward(
        packed, state, action, state_size=state_size, reward_size=reward_size)
    jax.block_until_ready((pred_states, pred_rewards))

    # Sanity checks against a pure-JAX reference of the same (unpacked) MLPs.
    combined = jnp.concatenate([state, action], axis=1)
    for e in range(ensemble_size):
        sw1, sb1, sw2, sb2 = params["state"][e]
        ref_s = jnp.maximum(combined @ sw1 + sb1, 0.0) @ sw2 + sb2
        assert pred_states[e].shape == (batch, state_size)
        assert jnp.allclose(pred_states[e], ref_s, atol=1e-5, rtol=1e-5)

        rw1, rb1, rw2, rb2 = params["reward"][e]
        ref_r = jnp.maximum(combined @ rw1 + rb1, 0.0) @ rw2 + rb2
        assert pred_rewards[e].shape == (batch, reward_size)
        assert jnp.allclose(pred_rewards[e], ref_r, atol=1e-5, rtol=1e-5)

    print("KERNEL_OK")
</pallas_src>

<mosaic_0001>
module attributes {stable_mosaic.version = 11 : i64} {
  func.func @_fused_ensemble_kernel(%arg0: i32, %arg1: memref<8x25xf32, #tpu.memory_space<vmem>>, %arg2: memref<25x192xf32, #tpu.memory_space<vmem>>, %arg3: memref<192x256xf32, #tpu.memory_space<vmem>>, %arg4: memref<1x256xf32, #tpu.memory_space<vmem>>, %arg5: memref<8x256xf32, #tpu.memory_space<vmem>>) attributes {dimension_semantics = [#tpu.dimension_semantics<arbitrary>], iteration_bounds = array<i64: 1>, scalar_prefetch = 0 : i64, scratch_operands = 0 : i64, tpu.core_type = #tpu.core_type<tc>, window_params = [{pipeline_mode = #tpu.pipeline_mode<synchronous>, transform_indices = @transform_0, window_bounds = array<i64: 8, 25>}, {pipeline_mode = #tpu.pipeline_mode<synchronous>, transform_indices = @transform_1, window_bounds = array<i64: 25, 192>}, {pipeline_mode = #tpu.pipeline_mode<synchronous>, transform_indices = @transform_2, window_bounds = array<i64: 192, 256>}, {pipeline_mode = #tpu.pipeline_mode<synchronous>, transform_indices = @transform_3, window_bounds = array<i64: 1, 256>}, {pipeline_mode = #tpu.pipeline_mode<synchronous>, transform_indices = @transform_4, window_bounds = array<i64: 8, 256>}]} {
    %c0 = arith.constant 0 : index
    %c0_0 = arith.constant 0 : index
    %0 = vector.load %arg1[%c0, %c0_0] : memref<8x25xf32, #tpu.memory_space<vmem>>, vector<8x25xf32>
    %c0_1 = arith.constant 0 : index
    %c0_2 = arith.constant 0 : index
    %1 = vector.load %arg2[%c0_1, %c0_2] : memref<25x192xf32, #tpu.memory_space<vmem>>, vector<25x192xf32>
    %cst = arith.constant dense<0.000000e+00> : vector<8x192xf32>
    %2 = tpu.matmul %0, %1, %cst {dimension_numbers = #tpu.dot_dimension_numbers<[1], [0], [0], [1], [0, 0, 1, 1], [], []>} : vector<8x25xf32>, vector<25x192xf32>, vector<8x192xf32> -> vector<8x192xf32>
    %cst_3 = arith.constant 0.000000e+00 : f32
    %3 = vector.broadcast %cst_3 : f32 to vector<8x192xf32>
    %4 = arith.maximumf %2, %3 : vector<8x192xf32>
    %c0_4 = arith.constant 0 : index
    %c0_5 = arith.constant 0 : index
    %5 = vector.load %arg3[%c0_4, %c0_5] : memref<192x256xf32, #tpu.memory_space<vmem>>, vector<192x256xf32>
    %cst_6 = arith.constant dense<0.000000e+00> : vector<8x256xf32>
    %6 = tpu.matmul %4, %5, %cst_6 {dimension_numbers = #tpu.dot_dimension_numbers<[1], [0], [0], [1], [0, 0, 1, 1], [], []>} : vector<8x192xf32>, vector<192x256xf32>, vector<8x256xf32> -> vector<8x256xf32>
    %c0_7 = arith.constant 0 : index
    %c0_8 = arith.constant 0 : index
    %7 = vector.load %arg4[%c0_7, %c0_8] : memref<1x256xf32, #tpu.memory_space<vmem>>, vector<1x256xf32>
    %8 = vector.broadcast %7 : vector<1x256xf32> to vector<8x256xf32>
    %9 = arith.addf %6, %8 : vector<8x256xf32>
    %c0_9 = arith.constant 0 : index
    %c0_10 = arith.constant 0 : index
    %10 = vector.load %arg5[%c0_9, %c0_10] : memref<8x256xf32, #tpu.memory_space<vmem>>, vector<8x256xf32>
    tpu.vector_store %arg5[%c0_9, %c0_10], %9 {strides = array<i32>} : memref<8x256xf32, #tpu.memory_space<vmem>>, vector<8x256xf32>,
    return
  }
  func.func @transform_0(%arg0: i32) -> (i32, i32) {
    %c0_i32 = arith.constant 0 : i32
    %c0_i32_0 = arith.constant 0 : i32
    %c0_i32_1 = arith.constant 0 : i32
    return %c0_i32, %c0_i32_0 : i32, i32
  }
  func.func @transform_1(%arg0: i32) -> (i32, i32) {
    %c0_i32 = arith.constant 0 : i32
    %c0_i32_0 = arith.constant 0 : i32
    %c0_i32_1 = arith.constant 0 : i32
    return %c0_i32, %c0_i32_0 : i32, i32
  }
  func.func @transform_2(%arg0: i32) -> (i32, i32) {
    %c0_i32 = arith.constant 0 : i32
    %c0_i32_0 = arith.constant 0 : i32
    %c0_i32_1 = arith.constant 0 : i32
    return %c0_i32, %c0_i32_0 : i32, i32
  }
  func.func @transform_3(%arg0: i32) -> (i32, i32) {
    %c0_i32 = arith.constant 0 : i32
    %c0_i32_0 = arith.constant 0 : i32
    %c0_i32_1 = arith.constant 0 : i32
    return %c0_i32, %c0_i32_0 : i32, i32
  }
  func.func @transform_4(%arg0: i32) -> (i32, i32) {
    %c0_i32 = arith.constant 0 : i32
    %c0_i32_0 = arith.constant 0 : i32
    %c0_i32_1 = arith.constant 0 : i32
    return %c0_i32, %c0_i32_0 : i32, i32
  }
}

</mosaic_0001>

<llo_original>
// kernel: simple_dynamic_model_forward.1
$region0: #{simple_dynamic_model_forward.1}
  #allocation0 [shape = 'u32[]', space=smem, size = 0x4, offset = 0x4, fixed_abs, tag = 'smem constant byte address 0x4 - core index']
  #allocation1 [shape = 'u32[144,128]{1,0:T(1,128)}', space=vmem, size = 0x12000, scoped, tag = 'internal scratch']
  %s0 = inlined_call_operand.vmem [shape: f32[8,25], index: 0, kind: input, shape index: {}]
  %s1 = inlined_call_operand.hbm [shape: f32[25,192], index: 1, kind: input, shape index: {}]
  %s2 = inlined_call_operand.hbm [shape: f32[192,256], index: 2, kind: input, shape index: {}]
  %s3 = inlined_call_operand.vmem [shape: f32[1,256], index: 3, kind: input, shape index: {}]
  %s4 = inlined_call_operand.vmem [shape: f32[8,256], index: 4, kind: output, shape index: {}]
  %s5 = sld [smem:[#allocation0]]
  $region34: #{simple_dynamic_model_forward.1} parent=0
    _
  %s7 = ssub.s32 1, %s5
  %s8 = scalar_select 0, %s7, %s5
  $region1: #{simple_dynamic_model_forward.1} parent=0
    #allocation2 [shape = 'u8[32768]{0}', space=vmem, size = 0x8000, scoped, tag = 'input window, operand 1, single buffered']
    #allocation3 [shape = 's32[1]{0}', space=sflag, size = 0x4, scoped, tag = 'scoped memory for simple_dynamic_model_forward.1']
    #allocation4 [shape = 'u8[196608]{0}', space=vmem, size = 0x30000, scoped, tag = 'input window, operand 2, single buffered']
    #allocation5 [shape = 's32[1]{0}', space=sflag, size = 0x4, scoped, tag = 'scoped memory for simple_dynamic_model_forward.1']
    %9 = vsyncpa [#allocation3], 0
    %10 = vsyncpa [#allocation5], 0
    // Predicated region
    $region2: #{simple_dynamic_model_forward.1} parent=1 // pred_check
      _
    $region3: #{simple_dynamic_model_forward.1} parent=1 // pred_check_branch
      %12 = sbr.rel (0) target = $region5
    $region4: #{simple_dynamic_model_forward.1} parent=1 // pred_region
      _
    $region5: #{simple_dynamic_model_forward.1} parent=1 // pred_fallthru
      _
    // Predicated region
    $region6: #{simple_dynamic_model_forward.1} parent=1 // pred_check
      _
    $region7: #{simple_dynamic_model_forward.1} parent=1 // pred_check_branch
      %14 = sbr.rel (0) target = $region9
    $region8: #{simple_dynamic_model_forward.1} parent=1 // pred_region
      %s16 = ssub.s32 1024, 1024
      %17 = vsyncadd [#allocation3], %s16
      %s18 = sshll.u32 [#allocation2], 4
      %s19 = int_to_ptr.vmem [resolvable:$true] %s18
      %24 = dma.hbm_to_vmem [thread:$0]  %s1, 1024, %s19, [#allocation3], 256, 256, 16
    $region9: #{simple_dynamic_model_forward.1} parent=1 // pred_fallthru
      _
    // Predicated region
    $region10: #{simple_dynamic_model_forward.1} parent=1 // pred_check
      _
    $region11: #{simple_dynamic_model_forward.1} parent=1 // pred_check_branch
      %26 = sbr.rel (0) target = $region13
    $region12: #{simple_dynamic_model_forward.1} parent=1 // pred_region
      %s28 = ssub.s32 6144, 6144
      %29 = vsyncadd [#allocation5], %s28
      %s30 = sshll.u32 [#allocation4], 4
      %s31 = int_to_ptr.vmem [resolvable:$true] %s30
      %36 = dma.hbm_to_vmem [thread:$0]  %s2, 6144, %s31, [#allocation5], 256, 256, 16
    $region13: #{simple_dynamic_model_forward.1} parent=1 // pred_fallthru
      _
    // Predicated region
    $region14: #{simple_dynamic_model_forward.1} parent=1 // pred_check
      _
    $region15: #{simple_dynamic_model_forward.1} parent=1 // pred_check_branch
      %38 = sbr.rel (0) target = $region17
    $region16: #{simple_dynamic_model_forward.1} parent=1 // pred_region
      _
    $region17: #{simple_dynamic_model_forward.1} parent=1 // pred_fallthru
      _
    // Predicated region
    $region18: #{simple_dynamic_model_forward.1} parent=1 // pred_check
      _
    $region19: #{simple_dynamic_model_forward.1} parent=1 // pred_check_branch
      %40 = sbr.rel (0) target = $region21
    $region20: #{simple_dynamic_model_forward.1} parent=1 // pred_region
      %41 = dma.done [#allocation3], 1024
    $region21: #{simple_dynamic_model_forward.1} parent=1 // pred_fallthru
      _
    // Predicated region
    $region22: #{simple_dynamic_model_forward.1} parent=1 // pred_check
      _
    $region23: #{simple_dynamic_model_forward.1} parent=1 // pred_check_branch
      %43 = sbr.rel (0) target = $region25
    $region24: #{simple_dynamic_model_forward.1} parent=1 // pred_region
      %44 = dma.done [#allocation5], 6144
    $region25: #{simple_dynamic_model_forward.1} parent=1 // pred_fallthru
      _
    %v45 = vld [vmem:[%s0] sm:$0xff]
    %v46 = vld [vmem:[#allocation2] sm:$0xff]
    %v47 = vld [vmem:[#allocation2 + $0x8] sm:$0xff]
    %v48 = vld [vmem:[#allocation2 + $0x10] sm:$0xff]
    %v49 = vld [vmem:[#allocation2 + $0x18] sm:$0xff]
    %v50 = vld [vmem:[#allocation2 + $0x20] sm:$0xff]
    %v51 = vld [vmem:[#allocation2 + $0x28] sm:$0xff]
    %v52 = vld [vmem:[#allocation2 + $0x30] sm:$0x1]
    %v53 = vld [vmem:[#allocation2 + $0x38] sm:$0x1]
    %vm54 = vcmask 203776
    %v56 = vsel %vm54, %v45, 0
    %vm58 = vcmask 1040384
    %v60 = vsel %vm58, %v52, 0
    %v63 = vsel %vm58, %v53, 0
    %65 = vmatprep.subr.mxu0 %v47
    %66 = vmatpush1.msra.mxu0 %v46
    %67 = vmatprep.subr.mxu0 %v49
    %68 = vmatpush1.msra.mxu0 %v48
    %69 = vmatprep.subr.mxu0 %v51
    %70 = vmatpush1.msra.mxu0 %v50
    %71 = vmatprep.subr.mxu0 %v63
    %72 = vmatpush1.msra.mxu0 %v60
    %73 = vmatprep.subr.mxu0 0.0
    %74 = vmatpush1.msra.mxu0 0.0
    %75 = vmatprep.subr.mxu0 0.0
    %76 = vmatpush1.msra.mxu0 0.0
    %77 = vmatprep.subr.mxu0 0.0
    %78 = vmatpush1.msra.mxu0 0.0
    %79 = vmatprep.subr.mxu0 0.0
    %80 = vmatpush1.msra.mxu0 0.0
    %81 = vmatprep.subr.mxu0 0.0
    %82 = vmatpush1.msra.mxu0 0.0
    %83 = vmatprep.subr.mxu0 0.0
    %84 = vmatpush1.msra.mxu0 0.0
    %85 = vmatprep.subr.mxu0 0.0
    %86 = vmatpush1.msra.mxu0 0.0
    %87 = vmatprep.subr.mxu0 0.0
    %88 = vmatpush1.msra.mxu0 0.0
    %89 = vmatprep.subr.mxu0 0.0
    %90 = vmatpush1.msra.mxu0 0.0
    %91 = vmatprep.subr.mxu0 0.0
    %92 = vmatpush1.msra.mxu0 0.0
    %93 = vmatprep.subr.mxu0 0.0
    %94 = vmatpush1.msra.mxu0 0.0
    %95 = vmatprep.subr.mxu0 0.0
    %96 = vmatpush1.msra.mxu0 0.0
    %97 = vmatprep.subr.mxu0 0.0
    %98 = vmatpush1.msra.mxu0 0.0
    %99 = vmatprep.subr.mxu0 0.0
    %100 = vmatpush1.msra.mxu0 0.0
    %101 = vmatprep.subr.mxu0 0.0
    %102 = vmatpush1.msra.mxu0 0.0
    %103 = vmatprep.subr.mxu0 0.0
    %104 = vmatpush1.msra.mxu0 0.0
    %105 = vmatprep.subr.mxu0 0.0
    %106 = vmatpush1.msra.mxu0 0.0
    %107 = vmatprep.subr.mxu0 0.0
    %108 = vmatpush1.msra.mxu0 0.0
    %109 = vmatprep.subr.mxu0 0.0
    %110 = vmatpush1.msra.mxu0 0.0
    %111 = vmatprep.subr.mxu0 0.0
    %112 = vmatpush1.msra.mxu0 0.0
    %113 = vmatprep.subr.mxu0 0.0
    %114 = vmatpush1.msra.mxu0 0.0
    %115 = vmatprep.subr.mxu0 0.0
    %116 = vmatpush1.msra.mxu0 0.0
    %117 = vmatprep.subr.mxu0 0.0
    %118 = vmatpush1.msra.mxu0 0.0
    %119 = vmatprep.subr.mxu0 0.0
    %120 = vmatpush1.msra.mxu0 0.0
    %121 = vmatprep.subr.mxu0 0.0
    %122 = vmatpush1.msra.mxu0 0.0
    %123 = vmatprep.subr.mxu0 0.0
    %124 = vmatpush1.msra.mxu0 0.0
    %125 = vmatprep.subr.mxu0 0.0
    %126 = vmatpush1.msra.mxu0 0.0
    %127 = vmatprep.subr.mxu0 0.0
    %128 = vmatpush1.msra.mxu0 0.0
    %129 = vmatprep.mubr.f32.mxu0 0.0
    %130 = vmatmul.mubr.f32.gmra.mrb[0].mxu0 %v56
    %v131 = vpop.f32.mrb[0].mxu0
    %v132 = vadd.f32 0.0, %v131
    %v133 = vpop.f32.mrb[0].mxu0
    %v134 = vadd.f32 0.0, %v133
    %135 = vdwg.mxu0
    %v136 = vmax.f32 %v132, 0.0
    %v137 = vmax.f32 %v134, 0.0
    %v138 = vld [vmem:[#allocation4] sm:$0xff]
    %v139 = vld [vmem:[#allocation4 + $0x8] sm:$0xff]
    %v140 = vld [vmem:[#allocation4 + $0x10] sm:$0xff]
    %v141 = vld [vmem:[#allocation4 + $0x18] sm:$0xff]
    %v142 = vld [vmem:[#allocation4 + $0x20] sm:$0xff]
    %v143 = vld [vmem:[#allocation4 + $0x28] sm:$0xff]
    %v144 = vld [vmem:[#allocation4 + $0x30] sm:$0xff]
    %v145 = vld [vmem:[#allocation4 + $0x38] sm:$0xff]
    %v146 = vld [vmem:[#allocation4 + $0x40] sm:$0xff]
    %v147 = vld [vmem:[#allocation4 + $0x48] sm:$0xff]
    %v148 = vld [vmem:[#allocation4 + $0x50] sm:$0xff]
    %v149 = vld [vmem:[#allocation4 + $0x58] sm:$0xff]
    %v150 = vld [vmem:[#allocation4 + $0x60] sm:$0xff]
    %v151 = vld [vmem:[#allocation4 + $0x68] sm:$0xff]
    %v152 = vld [vmem:[#allocation4 + $0x70] sm:$0xff]
    %v153 = vld [vmem:[#allocation4 + $0x78] sm:$0xff]
    %v154 = vld [vmem:[#allocation4 + $0x80] sm:$0xff]
    %v155 = vld [vmem:[#allocation4 + $0x88] sm:$0xff]
    %v156 = vld [vmem:[#allocation4 + $0x90] sm:$0xff]
    %v157 = vld [vmem:[#allocation4 + $0x98] sm:$0xff]
    %v158 = vld [vmem:[#allocation4 + $0xa0] sm:$0xff]
    %v159 = vld [vmem:[#allocation4 + $0xa8] sm:$0xff]
    %v160 = vld [vmem:[#allocation4 + $0xb0] sm:$0xff]
    %v161 = vld [vmem:[#allocation4 + $0xb8] sm:$0xff]
    %v162 = vld [vmem:[#allocation4 + $0xc0] sm:$0xff]
    %v163 = vld [vmem:[#allocation4 + $0xc8] sm:$0xff]
    %v164 = vld [vmem:[#allocation4 + $0xd0] sm:$0xff]
    %v165 = vld [vmem:[#allocation4 + $0xd8] sm:$0xff]
    %v166 = vld [vmem:[#allocation4 + $0xe0] sm:$0xff]
    %v167 = vld [vmem:[#allocation4 + $0xe8] sm:$0xff]
    %v168 = vld [vmem:[#allocation4 + $0xf0] sm:$0xff]
    %v169 = vld [vmem:[#allocation4 + $0xf8] sm:$0xff]
    %v170 = vld [vmem:[#allocation4 + $0x100] sm:$0xff]
    %v171 = vld [vmem:[#allocation4 + $0x108] sm:$0xff]
    %v172 = vld [vmem:[#allocation4 + $0x110] sm:$0xff]
    %v173 = vld [vmem:[#allocation4 + $0x118] sm:$0xff]
    %v174 = vld [vmem:[#allocation4 + $0x120] sm:$0xff]
    %v175 = vld [vmem:[#allocation4 + $0x128] sm:$0xff]
    %v176 = vld [vmem:[#allocation4 + $0x130] sm:$0xff]
    %v177 = vld [vmem:[#allocation4 + $0x138] sm:$0xff]
    %v178 = vld [vmem:[#allocation4 + $0x140] sm:$0xff]
    %v179 = vld [vmem:[#allocation4 + $0x148] sm:$0xff]
    %v180 = vld [vmem:[#allocation4 + $0x150] sm:$0xff]
    %v181 = vld [vmem:[#allocation4 + $0x158] sm:$0xff]
    %v182 = vld [vmem:[#allocation4 + $0x160] sm:$0xff]
    %v183 = vld [vmem:[#allocation4 + $0x168] sm:$0xff]
    %v184 = vld [vmem:[#allocation4 + $0x170] sm:$0xff]
    %v185 = vld [vmem:[#allocation4 + $0x178] sm:$0xff]
    %v186 = vld [vmem:[%s3] sm:$0x3]
    %v188 = vlaneseq
    %v189 = vshrl.u32 %v188, 7
    %v190 = vsub.s32 0, %v189
    %v191 = vrot.slane %v186, %v190
    %v192 = vlaneseq
    %v193 = vshrl.u32 %v192, 7
    %v194 = vsub.s32 1, %v193
    %v195 = vrot.slane %v186, %v194
    %vm198 = vcmask 523264
    %v200 = vsel %vm198, %v137, 0
    %202 = vmatprep.subr.mxu0 %v139
    %203 = vmatpush1.msra.mxu0 %v138
    %204 = vmatprep.subr.mxu0 %v141
    %205 = vmatpush1.msra.mxu0 %v140
    %206 = vmatprep.subr.mxu0 %v143
    %207 = vmatpush1.msra.mxu0 %v142
    %208 = vmatprep.subr.mxu0 %v145
    %209 = vmatpush1.msra.mxu0 %v144
    %210 = vmatprep.subr.mxu0 %v147
    %211 = vmatpush1.msra.mxu0 %v146
    %212 = vmatprep.subr.mxu0 %v149
    %213 = vmatpush1.msra.mxu0 %v148
    %214 = vmatprep.subr.mxu0 %v151
    %215 = vmatpush1.msra.mxu0 %v150
    %216 = vmatprep.subr.mxu0 %v153
    %217 = vmatpush1.msra.mxu0 %v152
    %218 = vmatprep.subr.mxu0 %v155
    %219 = vmatpush1.msra.mxu0 %v154
    %220 = vmatprep.subr.mxu0 %v157
    %221 = vmatpush1.msra.mxu0 %v156
    %222 = vmatprep.subr.mxu0 %v159
    %223 = vmatpush1.msra.mxu0 %v158
    %224 = vmatprep.subr.mxu0 %v161
    %225 = vmatpush1.msra.mxu0 %v160
    %226 = vmatprep.subr.mxu0 %v163
    %227 = vmatpush1.msra.mxu0 %v162
    %228 = vmatprep.subr.mxu0 %v165
    %229 = vmatpush1.msra.mxu0 %v164
    %230 = vmatprep.subr.mxu0 %v167
    %231 = vmatpush1.msra.mxu0 %v166
    %232 = vmatprep.subr.mxu0 %v169
    %233 = vmatpush1.msra.mxu0 %v168
    %234 = vmatprep.subr.mxu0 %v171
    %235 = vmatpush1.msra.mxu0 %v170
    %236 = vmatprep.subr.mxu0 %v173
    %237 = vmatpush1.msra.mxu0 %v172
    %238 = vmatprep.subr.mxu0 %v175
    %239 = vmatpush1.msra.mxu0 %v174
    %240 = vmatprep.subr.mxu0 %v177
    %241 = vmatpush1.msra.mxu0 %v176
    %242 = vmatprep.subr.mxu0 %v179
    %243 = vmatpush1.msra.mxu0 %v178
    %244 = vmatprep.subr.mxu0 %v181
    %245 = vmatpush1.msra.mxu0 %v180
    %246 = vmatprep.subr.mxu0 %v183
    %247 = vmatpush1.msra.mxu0 %v182
    %248 = vmatprep.subr.mxu0 %v185
    %249 = vmatpush1.msra.mxu0 %v184
    %250 = vmatprep.subr.mxu0 0.0
    %251 = vmatpush1.msra.mxu0 0.0
    %252 = vmatprep.subr.mxu0 0.0
    %253 = vmatpush1.msra.mxu0 0.0
    %254 = vmatprep.subr.mxu0 0.0
    %255 = vmatpush1.msra.mxu0 0.0
    %256 = vmatprep.subr.mxu0 0.0
    %257 = vmatpush1.msra.mxu0 0.0
    %258 = vmatprep.subr.mxu0 0.0
    %259 = vmatpush1.msra.mxu0 0.0
    %260 = vmatprep.subr.mxu0 0.0
    %261 = vmatpush1.msra.mxu0 0.0
    %262 = vmatprep.subr.mxu0 0.0
    %263 = vmatpush1.msra.mxu0 0.0
    %264 = vmatprep.subr.mxu0 0.0
    %265 = vmatpush1.msra.mxu0 0.0
    %266 = vmatprep.mubr.f32.mxu0 %v200
    %267 = vmatmul.mubr.f32.gmra.mrb[0].mxu0 %v136
    %v268 = vpop.f32.mrb[0].mxu0
    %v269 = vadd.f32 %v191, %v268
    %v270 = vpop.f32.mrb[0].mxu0
    %v271 = vadd.f32 %v195, %v270
    %272 = vdwg.mxu0
    %273 = vst [vmem:[%s4] sm:$0xff] %v269
    %274 = vst [vmem:[%s4 + $0x8] sm:$0xff] %v271
    // Predicated region
    $region26: #{simple_dynamic_model_forward.1} parent=1 // pred_check
      _
    $region27: #{simple_dynamic_model_forward.1} parent=1 // pred_check_branch
      %276 = sbr.rel (0) target = $region29
    $region28: #{simple_dynamic_model_forward.1} parent=1 // pred_region
      _
    $region29: #{simple_dynamic_model_forward.1} parent=1 // pred_fallthru
      _
    // Predicated region
    $region30: #{simple_dynamic_model_forward.1} parent=1 // pred_check
      _
    $region31: #{simple_dynamic_model_forward.1} parent=1 // pred_check_branch
      %278 = sbr.rel (0) target = $region33
    $region32: #{simple_dynamic_model_forward.1} parent=1 // pred_region
      _
    $region33: #{simple_dynamic_model_forward.1} parent=1 // pred_fallthru
      _
    %279 = vsyncpa [#allocation3], 1
    %280 = vsyncpa [#allocation5], 1

</llo_original>
